<compile_context>
chip_gen: v5e
topology: v5e:2x2
jax: 0.10.0
libtpu: 0.0.40
codegen_flags: <defaults>
</compile_context>

<pallas_src>
import functools

import jax
import jax.numpy as jnp
from jax import lax
from jax.experimental import pallas as pl
from jax.experimental.pallas import tpu as pltpu


def _vmem_budget():
    """(vmem_limit_bytes, per-tile working-set budget) per TPU generation."""
    limit, budget = 32 * 1024 * 1024, 10 * 1024 * 1024   # safe on v7x / unknown
    try:
        cap = pltpu.get_tpu_info().vmem_capacity_bytes
        if cap and cap > 96 * 1024 * 1024:                # v5e / v6e: 128 MiB
            limit, budget = 100 * 1024 * 1024, 36 * 1024 * 1024
    except Exception:
        pass
    return limit, budget


def _choose_batch_tile(n, per_n_bytes, budget_bytes):
    """Batch-tile size within the VMEM budget; keeps >= 2 grid steps when N >= 2
    (v7x megacore) and prefers a divisor of N so no ragged tail tile is needed."""
    cap = max(1, budget_bytes // max(per_n_bytes, 1))
    if n >= 2:
        cap = min(cap, (n + 1) // 2)          # guarantee at least 2 grid steps
    cap = min(cap, n)
    best_div = 1
    for t in range(1, cap + 1):
        if n % t == 0:
            best_div = t
    if 2 * best_div >= cap:
        return best_div                        # divides N, no padding needed
    return cap                                 # ragged tail; wrapper pads + kernel masks


def _conv_act_kernel(x_ref, w_ref, b_ref, act_ref, stats_ref, xpad_ref, *,
                     kernel_size, dilation, pad_l, pad_r, l_out, tile_n,
                     n_total, ragged):
    """Pass 1: dilated Conv1d (K accumulated MXU matmuls) + bias + ReLU + BN partials.

    x_ref:     (TN, C_in, L)        native-layout input tile
    w_ref:     (K, C_out, C_in)     per-tap weight matrices
    b_ref:     (C_out, 1)           conv bias (f32)
    act_ref:   (TN, C_out, L_out)   activations, already in the final layout
    stats_ref: (1, C_out, 2)        per-tile [sum, sum_sq] per channel (f32)
    xpad_ref:  (C_in, TN, L_pad)    VMEM scratch: padded, channel-major x
    """
    tn, c_in, l_in = x_ref.shape
    c_out = b_ref.shape[0]

    # Channel-major padded copy of the tile (outer/sublane swap; lane axis kept).
    xpad_ref[:, :, pad_l:pad_l + l_in] = jnp.transpose(x_ref[...], (1, 0, 2))
    if pad_l:
        xpad_ref[:, :, :pad_l] = jnp.zeros((c_in, tn, pad_l), x_ref.dtype)
    if pad_r:
        xpad_ref[:, :, pad_l + l_in:] = jnp.zeros((c_in, tn, pad_r), x_ref.dtype)

    # Conv as K accumulated rank-2 matmuls; f32 accumulation on the MXU.
    acc = None
    for k in range(kernel_size):
        win = xpad_ref[:, :, k * dilation:k * dilation + l_out]   # (C_in, TN, L_out)
        rhs = win.reshape(c_in, tn * l_out)
        part = jnp.dot(w_ref[k], rhs, preferred_element_type=jnp.float32)
        acc = part if acc is None else acc + part                 # (C_out, TN*L_out)

    acc = acc + b_ref[...].astype(jnp.float32)                    # bias
    act = jnp.maximum(acc, 0.0)                                   # ReLU
    act3 = act.reshape(c_out, tn, l_out)

    # One-pass BN partials (mask zero-padded batch rows of a ragged last tile).
    if ragged:
        t = pl.program_id(0)
        valid = jnp.minimum(n_total - t * tile_n, tile_n)
        mask = lax.broadcasted_iota(jnp.int32, (1, tn, 1), 1) < valid
        masked = jnp.where(mask, act3, 0.0)
    else:
        masked = act3
    s = jnp.sum(jnp.sum(masked, axis=2), axis=1, keepdims=True)           # (C_out, 1)
    s2 = jnp.sum(jnp.sum(masked * masked, axis=2), axis=1, keepdims=True)
    stats_ref[0] = jnp.concatenate([s, s2], axis=1)                        # (C_out, 2)

    # Store directly in the final (N, C_out, L_out) layout (sublane swap only).
    act_ref[...] = jnp.transpose(act3, (1, 0, 2)).astype(act_ref.dtype)


def _bn_apply_kernel(act_ref, ss_ref, o_ref):
    """Pass 2: y = act * scale + shift, lane-dense, already in the final layout.

    act_ref: (TN, C_out, L_out)
    ss_ref:  (2, C_out, 1)   packed [scale; shift] (f32)
    o_ref:   (TN, C_out, L_out)
    """
    a = act_ref[...].astype(jnp.float32)
    scale = ss_ref[0].astype(jnp.float32)          # (C_out, 1)
    shift = ss_ref[1].astype(jnp.float32)
    o_ref[...] = (a * scale + shift).astype(o_ref.dtype)


def single_conv_forward(x, weight, bias, gamma, beta, *, padding, dilation,
                        eps=1e-5):
    """x: (N, C_in, L) NCL.  weight: (C_out, C_in, K).  Returns (N, C_out, L_out)."""
    N, C_in, L = x.shape
    C_out, _, K = weight.shape

    if padding == "same":
        total = dilation * (K - 1)
        pad_l, pad_r = total // 2, total - total // 2
    elif padding == "valid":
        pad_l = pad_r = 0
    else:
        pad_l = pad_r = int(padding)
    L_pad = L + pad_l + pad_r
    L_out = L_pad - dilation * (K - 1)

    # Tiny parameter repacking only (no HBM passes over x or y).
    w3 = jnp.transpose(weight, (2, 0, 1))                    # (K, C_out, C_in)
    b2 = bias.reshape(C_out, 1).astype(jnp.float32)

    # VMEM-budgeted batch tile (includes padded-x scratch and f32 temporaries).
    vmem_limit, budget = _vmem_budget()
    isz = jnp.dtype(x.dtype).itemsize
    per_n = (isz * (2 * C_in * L + C_in * L_pad + 2 * C_in * L_out
                    + 2 * C_out * L_out)
             + 4 * 4 * C_out * L_out)
    per_n = int(per_n * 1.25) + 1                            # rounding slack
    TN = _choose_batch_tile(N, per_n, budget)
    num_tiles = -(-N // TN)
    N_pad = num_tiles * TN
    ragged = N_pad > N
    if ragged:
        x = jnp.pad(x, ((0, N_pad - N), (0, 0), (0, 0)))

    cparams = pltpu.CompilerParams(
        dimension_semantics=("parallel",),
        vmem_limit_bytes=vmem_limit)

    # ---- Pass 1: conv + bias + ReLU (final-layout act) + per-tile BN partials ----
    act, stats = pl.pallas_call(
        functools.partial(_conv_act_kernel, kernel_size=K, dilation=dilation,
                          pad_l=pad_l, pad_r=pad_r, l_out=L_out, tile_n=TN,
                          n_total=N, ragged=ragged),
        grid=(num_tiles,),
        in_specs=[
            pl.BlockSpec((TN, C_in, L), lambda t: (t, 0, 0)),
            pl.BlockSpec((K, C_out, C_in), lambda t: (0, 0, 0)),
            pl.BlockSpec((C_out, 1), lambda t: (0, 0)),
        ],
        out_specs=[
            pl.BlockSpec((TN, C_out, L_out), lambda t: (t, 0, 0)),
            pl.BlockSpec((1, C_out, 2), lambda t: (t, 0, 0)),
        ],
        out_shape=[
            jax.ShapeDtypeStruct((N_pad, C_out, L_out), x.dtype),
            jax.ShapeDtypeStruct((num_tiles, C_out, 2), jnp.float32),
        ],
        scratch_shapes=[pltpu.VMEM((C_in, TN, L_pad), x.dtype)],
        compiler_params=cparams,
    )(x, w3, b2)

    # ---- Global BN statistics (tiny per-channel math; XLA) ----
    count = float(N * L_out)
    s = jnp.sum(stats[:, :, 0], axis=0)
    s2 = jnp.sum(stats[:, :, 1], axis=0)
    mean = s / count
    var = jnp.maximum(s2 / count - mean * mean, 0.0)         # biased (training BN)
    scale = gamma.astype(jnp.float32) / jnp.sqrt(var + eps)
    shift = beta.astype(jnp.float32) - mean * scale
    ss = jnp.stack([scale, shift]).reshape(2, C_out, 1)

    # ---- Pass 2: normalize, lane-dense, output already in (N, C_out, L_out) ----
    y = pl.pallas_call(
        _bn_apply_kernel,
        grid=(num_tiles,),
        in_specs=[
            pl.BlockSpec((TN, C_out, L_out), lambda t: (t, 0, 0)),
            pl.BlockSpec((2, C_out, 1), lambda t: (0, 0, 0)),
        ],
        out_specs=pl.BlockSpec((TN, C_out, L_out), lambda t: (t, 0, 0)),
        out_shape=jax.ShapeDtypeStruct((N_pad, C_out, L_out), x.dtype),
        input_output_aliases={0: 0},
        compiler_params=cparams,
    )(act, ss)

    return y[:N] if ragged else y


def _reference_forward(x, weight, bias, gamma, beta, *, padding, dilation,
                       eps=1e-5):
    """Pure-JAX reference mirroring PyTorch semantics (training-mode BN)."""
    C_out, _, K = weight.shape
    if padding == "same":
        total = dilation * (K - 1)
        pad = [(total // 2, total - total // 2)]
    elif padding == "valid":
        pad = [(0, 0)]
    else:
        pad = [(int(padding), int(padding))]
    out = lax.conv_general_dilated(
        x.astype(jnp.float32), weight.astype(jnp.float32),
        window_strides=(1,), padding=pad, rhs_dilation=(dilation,),
        dimension_numbers=("NCH", "OIH", "NCH"))
    out = out + bias.astype(jnp.float32)[None, :, None]
    out = jnp.maximum(out, 0.0)                                    # ReLU
    mean = jnp.mean(out, axis=(0, 2), keepdims=True)
    var = jnp.mean((out - mean) ** 2, axis=(0, 2), keepdims=True)
    y = (out - mean) / jnp.sqrt(var + eps)
    return (y * gamma[None, :, None] + beta[None, :, None]).astype(x.dtype)


if __name__ == "__main__":
    # Module hyper-params (synthetic instantiation of SingleConv, act = ReLU)
    in_channels, out_channels = 4, 8
    kernel_size, padding, dilation = 3, "same", 2

    key = jax.random.PRNGKey(0)
    k_x, k_w, k_b, k_g, k_be, k_x2 = jax.random.split(key, 6)
    weight = 0.1 * jax.random.normal(
        k_w, (out_channels, in_channels, kernel_size), jnp.float32)
    bias = 0.1 * jax.random.normal(k_b, (out_channels,), jnp.float32)
    gamma = 1.0 + 0.05 * jax.random.normal(k_g, (out_channels,), jnp.float32)
    beta = 0.05 * jax.random.normal(k_be, (out_channels,), jnp.float32)

    fwd = jax.jit(functools.partial(single_conv_forward,
                                    padding=padding, dilation=dilation))

    # Primary small input: N=2, C_in=4, L=16 (NCL, as PyTorch Conv1d expects).
    x = jax.random.normal(k_x, (2, in_channels, 16), jnp.float32)
    out = jax.block_until_ready(fwd(x, weight, bias, gamma, beta))
    ref = _reference_forward(x, weight, bias, gamma, beta,
                             padding=padding, dilation=dilation)
    assert out.shape == ref.shape, (out.shape, ref.shape)
    assert jnp.allclose(out, ref, atol=1e-4, rtol=1e-4), \
        f"max err {jnp.max(jnp.abs(out - ref))}"

    # Ragged-batch path (N not divisible by the chosen tile): padded + masked stats.
    x2 = jax.random.normal(k_x2, (5, in_channels, 16), jnp.float32)
    out2 = jax.block_until_ready(fwd(x2, weight, bias, gamma, beta))
    ref2 = _reference_forward(x2, weight, bias, gamma, beta,
                              padding=padding, dilation=dilation)
    assert out2.shape == ref2.shape, (out2.shape, ref2.shape)
    assert jnp.allclose(out2, ref2, atol=1e-4, rtol=1e-4), \
        f"max err {jnp.max(jnp.abs(out2 - ref2))}"

    print("KERNEL_OK")
</pallas_src>

<mosaic_0001>
module attributes {stable_mosaic.version = 11 : i64} {
  func.func @_conv_act_kernel(%arg0: i32, %arg1: memref<1x4x16xf32, #tpu.memory_space<vmem>>, %arg2: memref<3x8x4xf32, #tpu.memory_space<vmem>>, %arg3: memref<8x1xf32, #tpu.memory_space<vmem>>, %arg4: memref<1x8x16xf32, #tpu.memory_space<vmem>>, %arg5: memref<1x8x2xf32, #tpu.memory_space<vmem>>, %arg6: memref<4x1x20xf32, #tpu.memory_space<vmem>>) attributes {dimension_semantics = [#tpu.dimension_semantics<parallel>], iteration_bounds = array<i64: 2>, scalar_prefetch = 0 : i64, scratch_operands = 1 : i64, tpu.core_type = #tpu.core_type<tc>, window_params = [{transform_indices = @transform_0, window_bounds = array<i64: 1, 4, 16>}, {pipeline_mode = #tpu.pipeline_mode<synchronous>, transform_indices = @transform_1, window_bounds = array<i64: 3, 8, 4>}, {pipeline_mode = #tpu.pipeline_mode<synchronous>, transform_indices = @transform_2, window_bounds = array<i64: 8, 1>}, {transform_indices = @transform_3, window_bounds = array<i64: 1, 8, 16>}, {transform_indices = @transform_4, window_bounds = array<i64: 1, 8, 2>}]} {
    %c0 = arith.constant 0 : index
    %c0_0 = arith.constant 0 : index
    %c0_1 = arith.constant 0 : index
    %0 = vector.load %arg1[%c0, %c0_0, %c0_1] : memref<1x4x16xf32, #tpu.memory_space<vmem>>, vector<1x4x16xf32>
    %1 = tpu.transpose %0, [1, 0, 2] : vector<1x4x16xf32> -> vector<4x1x16xf32>
    %c0_2 = arith.constant 0 : index
    %c0_3 = arith.constant 0 : index
    %c2 = arith.constant 2 : index
    %2 = vector.load %arg6[%c0_2, %c0_3, %c2] : memref<4x1x20xf32, #tpu.memory_space<vmem>>, vector<4x1x16xf32>
    tpu.vector_store %arg6[%c0_2, %c0_3, %c2], %1 {strides = array<i32>} : memref<4x1x20xf32, #tpu.memory_space<vmem>>, vector<4x1x16xf32>,
    %cst = arith.constant 0.000000e+00 : f32
    %3 = vector.broadcast %cst : f32 to vector<4x1x2xf32>
    %c0_4 = arith.constant 0 : index
    %c0_5 = arith.constant 0 : index
    %c0_6 = arith.constant 0 : index
    %4 = vector.load %arg6[%c0_4, %c0_5, %c0_6] : memref<4x1x20xf32, #tpu.memory_space<vmem>>, vector<4x1x2xf32>
    tpu.vector_store %arg6[%c0_4, %c0_5, %c0_6], %3 {strides = array<i32>} : memref<4x1x20xf32, #tpu.memory_space<vmem>>, vector<4x1x2xf32>,
    %cst_7 = arith.constant 0.000000e+00 : f32
    %5 = vector.broadcast %cst_7 : f32 to vector<4x1x2xf32>
    %c0_8 = arith.constant 0 : index
    %c0_9 = arith.constant 0 : index
    %c18 = arith.constant 18 : index
    %6 = vector.load %arg6[%c0_8, %c0_9, %c18] : memref<4x1x20xf32, #tpu.memory_space<vmem>>, vector<4x1x2xf32>
    tpu.vector_store %arg6[%c0_8, %c0_9, %c18], %5 {strides = array<i32>} : memref<4x1x20xf32, #tpu.memory_space<vmem>>, vector<4x1x2xf32>,
    %c0_10 = arith.constant 0 : index
    %c0_11 = arith.constant 0 : index
    %c0_12 = arith.constant 0 : index
    %7 = vector.load %arg6[%c0_10, %c0_11, %c0_12] : memref<4x1x20xf32, #tpu.memory_space<vmem>>, vector<4x1x16xf32>
    %8 = vector.shape_cast %7 : vector<4x1x16xf32> to vector<4x16xf32>
    %c0_13 = arith.constant 0 : index
    %c0_14 = arith.constant 0 : index
    %c0_15 = arith.constant 0 : index
    %9 = vector.load %arg2[%c0_13, %c0_14, %c0_15] : memref<3x8x4xf32, #tpu.memory_space<vmem>>, vector<1x8x4xf32>
    %10 = vector.shape_cast %9 : vector<1x8x4xf32> to vector<8x4xf32>
    %cst_16 = arith.constant dense<0.000000e+00> : vector<8x16xf32>
    %11 = tpu.matmul %10, %8, %cst_16 {dimension_numbers = #tpu.dot_dimension_numbers<[1], [0], [0], [1], [0, 0, 1, 1], [], []>} : vector<8x4xf32>, vector<4x16xf32>, vector<8x16xf32> -> vector<8x16xf32>
    %c0_17 = arith.constant 0 : index
    %c0_18 = arith.constant 0 : index
    %c2_19 = arith.constant 2 : index
    %12 = vector.load %arg6[%c0_17, %c0_18, %c2_19] : memref<4x1x20xf32, #tpu.memory_space<vmem>>, vector<4x1x16xf32>
    %13 = vector.shape_cast %12 : vector<4x1x16xf32> to vector<4x16xf32>
    %c1 = arith.constant 1 : index
    %c0_20 = arith.constant 0 : index
    %c0_21 = arith.constant 0 : index
    %14 = vector.load %arg2[%c1, %c0_20, %c0_21] : memref<3x8x4xf32, #tpu.memory_space<vmem>>, vector<1x8x4xf32>
    %15 = vector.shape_cast %14 : vector<1x8x4xf32> to vector<8x4xf32>
    %cst_22 = arith.constant dense<0.000000e+00> : vector<8x16xf32>
    %16 = tpu.matmul %15, %13, %cst_22 {dimension_numbers = #tpu.dot_dimension_numbers<[1], [0], [0], [1], [0, 0, 1, 1], [], []>} : vector<8x4xf32>, vector<4x16xf32>, vector<8x16xf32> -> vector<8x16xf32>
    %17 = arith.addf %11, %16 : vector<8x16xf32>
    %c0_23 = arith.constant 0 : index
    %c0_24 = arith.constant 0 : index
    %c4 = arith.constant 4 : index
    %18 = vector.load %arg6[%c0_23, %c0_24, %c4] : memref<4x1x20xf32, #tpu.memory_space<vmem>>, vector<4x1x16xf32>
    %19 = vector.shape_cast %18 : vector<4x1x16xf32> to vector<4x16xf32>
    %c2_25 = arith.constant 2 : index
    %c0_26 = arith.constant 0 : index
    %c0_27 = arith.constant 0 : index
    %20 = vector.load %arg2[%c2_25, %c0_26, %c0_27] : memref<3x8x4xf32, #tpu.memory_space<vmem>>, vector<1x8x4xf32>
    %21 = vector.shape_cast %20 : vector<1x8x4xf32> to vector<8x4xf32>
    %cst_28 = arith.constant dense<0.000000e+00> : vector<8x16xf32>
    %22 = tpu.matmul %21, %19, %cst_28 {dimension_numbers = #tpu.dot_dimension_numbers<[1], [0], [0], [1], [0, 0, 1, 1], [], []>} : vector<8x4xf32>, vector<4x16xf32>, vector<8x16xf32> -> vector<8x16xf32>
    %23 = arith.addf %17, %22 : vector<8x16xf32>
    %c0_29 = arith.constant 0 : index
    %c0_30 = arith.constant 0 : index
    %24 = vector.load %arg3[%c0_29, %c0_30] : memref<8x1xf32, #tpu.memory_space<vmem>>, vector<8x1xf32>
    %25 = vector.broadcast %24 : vector<8x1xf32> to vector<8x16xf32>
    %26 = arith.addf %23, %25 : vector<8x16xf32>
    %cst_31 = arith.constant 0.000000e+00 : f32
    %27 = vector.broadcast %cst_31 : f32 to vector<8x16xf32>
    %28 = arith.maximumf %26, %27 : vector<8x16xf32>
    %29 = vector.shape_cast %28 : vector<8x16xf32> to vector<8x1x16xf32>
    %cst_32 = arith.constant dense<0.000000e+00> : vector<8x1xf32>
    %30 = vector.multi_reduction <add>, %29, %cst_32 [2] : vector<8x1x16xf32> to vector<8x1xf32>
    %cst_33 = arith.constant dense<0.000000e+00> : vector<8xf32>
    %31 = vector.multi_reduction <add>, %30, %cst_33 [1] : vector<8x1xf32> to vector<8xf32>
    %32 = vector.shape_cast %31 : vector<8xf32> to vector<8x1xf32>
    %33 = arith.mulf %29, %29 : vector<8x1x16xf32>
    %cst_34 = arith.constant dense<0.000000e+00> : vector<8x1xf32>
    %34 = vector.multi_reduction <add>, %33, %cst_34 [2] : vector<8x1x16xf32> to vector<8x1xf32>
    %cst_35 = arith.constant dense<0.000000e+00> : vector<8xf32>
    %35 = vector.multi_reduction <add>, %34, %cst_35 [1] : vector<8x1xf32> to vector<8xf32>
    %36 = vector.shape_cast %35 : vector<8xf32> to vector<8x1xf32>
    %37 = tpu.concatenate %32, %36 in 1 : vector<8x1xf32>, vector<8x1xf32> -> vector<8x2xf32>
    %c0_36 = arith.constant 0 : index
    %c0_37 = arith.constant 0 : index
    %c0_38 = arith.constant 0 : index
    %38 = vector.load %arg5[%c0_36, %c0_37, %c0_38] : memref<1x8x2xf32, #tpu.memory_space<vmem>>, vector<1x8x2xf32>
    %39 = vector.shape_cast %38 : vector<1x8x2xf32> to vector<8x2xf32>
    %40 = vector.shape_cast %37 : vector<8x2xf32> to vector<1x8x2xf32>
    tpu.vector_store %arg5[%c0_36, %c0_37, %c0_38], %40 {strides = array<i32>} : memref<1x8x2xf32, #tpu.memory_space<vmem>>, vector<1x8x2xf32>,
    %41 = tpu.transpose %29, [1, 0, 2] : vector<8x1x16xf32> -> vector<1x8x16xf32>
    %c0_39 = arith.constant 0 : index
    %c0_40 = arith.constant 0 : index
    %c0_41 = arith.constant 0 : index
    %42 = vector.load %arg4[%c0_39, %c0_40, %c0_41] : memref<1x8x16xf32, #tpu.memory_space<vmem>>, vector<1x8x16xf32>
    tpu.vector_store %arg4[%c0_39, %c0_40, %c0_41], %41 {strides = array<i32>} : memref<1x8x16xf32, #tpu.memory_space<vmem>>, vector<1x8x16xf32>,
    return
  }
  func.func @transform_0(%arg0: i32) -> (i32, i32, i32) {
    %c0_i32 = arith.constant 0 : i32
    %c0_i32_0 = arith.constant 0 : i32
    %c0_i32_1 = arith.constant 0 : i32
    return %arg0, %c0_i32, %c0_i32_0 : i32, i32, i32
  }
  func.func @transform_1(%arg0: i32) -> (i32, i32, i32) {
    %c0_i32 = arith.constant 0 : i32
    %c0_i32_0 = arith.constant 0 : i32
    %c0_i32_1 = arith.constant 0 : i32
    %c0_i32_2 = arith.constant 0 : i32
    return %c0_i32, %c0_i32_0, %c0_i32_1 : i32, i32, i32
  }
  func.func @transform_2(%arg0: i32) -> (i32, i32) {
    %c0_i32 = arith.constant 0 : i32
    %c0_i32_0 = arith.constant 0 : i32
    %c0_i32_1 = arith.constant 0 : i32
    return %c0_i32, %c0_i32_0 : i32, i32
  }
  func.func @transform_3(%arg0: i32) -> (i32, i32, i32) {
    %c0_i32 = arith.constant 0 : i32
    %c0_i32_0 = arith.constant 0 : i32
    %c0_i32_1 = arith.constant 0 : i32
    return %arg0, %c0_i32, %c0_i32_0 : i32, i32, i32
  }
  func.func @transform_4(%arg0: i32) -> (i32, i32, i32) {
    %c0_i32 = arith.constant 0 : i32
    %c0_i32_0 = arith.constant 0 : i32
    %c0_i32_1 = arith.constant 0 : i32
    return %arg0, %c0_i32, %c0_i32_0 : i32, i32, i32
  }
}

module attributes {stable_mosaic.version = 11 : i64} {
  func.func @_bn_apply_kernel(%arg0: i32, %arg1: memref<1x8x16xf32, #tpu.memory_space<vmem>>, %arg2: memref<2x8x1xf32, #tpu.memory_space<vmem>>, %arg3: memref<1x8x16xf32, #tpu.memory_space<vmem>>) attributes {dimension_semantics = [#tpu.dimension_semantics<parallel>], iteration_bounds = array<i64: 2>, scalar_prefetch = 0 : i64, scratch_operands = 0 : i64, tpu.core_type = #tpu.core_type<tc>, window_params = [{transform_indices = @transform_0, window_bounds = array<i64: 1, 8, 16>}, {pipeline_mode = #tpu.pipeline_mode<synchronous>, transform_indices = @transform_1, window_bounds = array<i64: 2, 8, 1>}, {transform_indices = @transform_2, window_bounds = array<i64: 1, 8, 16>}]} {
    %c0 = arith.constant 0 : index
    %c0_0 = arith.constant 0 : index
    %c0_1 = arith.constant 0 : index
    %0 = vector.load %arg1[%c0, %c0_0, %c0_1] : memref<1x8x16xf32, #tpu.memory_space<vmem>>, vector<1x8x16xf32>
    %c0_2 = arith.constant 0 : index
    %c0_3 = arith.constant 0 : index
    %c0_4 = arith.constant 0 : index
    %1 = vector.load %arg2[%c0_2, %c0_3, %c0_4] : memref<2x8x1xf32, #tpu.memory_space<vmem>>, vector<1x8x1xf32>
    %2 = vector.shape_cast %1 : vector<1x8x1xf32> to vector<8x1xf32>
    %c1 = arith.constant 1 : index
    %c0_5 = arith.constant 0 : index
    %c0_6 = arith.constant 0 : index
    %3 = vector.load %arg2[%c1, %c0_5, %c0_6] : memref<2x8x1xf32, #tpu.memory_space<vmem>>, vector<1x8x1xf32>
    %4 = vector.shape_cast %3 : vector<1x8x1xf32> to vector<8x1xf32>
    %5 = vector.shape_cast %2 : vector<8x1xf32> to vector<1x8x1xf32>
    %6 = vector.broadcast %5 : vector<1x8x1xf32> to vector<1x8x16xf32>
    %7 = arith.mulf %0, %6 : vector<1x8x16xf32>
    %8 = vector.shape_cast %4 : vector<8x1xf32> to vector<1x8x1xf32>
    %9 = vector.broadcast %8 : vector<1x8x1xf32> to vector<1x8x16xf32>
    %10 = arith.addf %7, %9 : vector<1x8x16xf32>
    %c0_7 = arith.constant 0 : index
    %c0_8 = arith.constant 0 : index
    %c0_9 = arith.constant 0 : index
    %11 = vector.load %arg3[%c0_7, %c0_8, %c0_9] : memref<1x8x16xf32, #tpu.memory_space<vmem>>, vector<1x8x16xf32>
    tpu.vector_store %arg3[%c0_7, %c0_8, %c0_9], %10 {strides = array<i32>} : memref<1x8x16xf32, #tpu.memory_space<vmem>>, vector<1x8x16xf32>,
    return
  }
  func.func @transform_0(%arg0: i32) -> (i32, i32, i32) {
    %c0_i32 = arith.constant 0 : i32
    %c0_i32_0 = arith.constant 0 : i32
    %c0_i32_1 = arith.constant 0 : i32
    return %arg0, %c0_i32, %c0_i32_0 : i32, i32, i32
  }
  func.func @transform_1(%arg0: i32) -> (i32, i32, i32) {
    %c0_i32 = arith.constant 0 : i32
    %c0_i32_0 = arith.constant 0 : i32
    %c0_i32_1 = arith.constant 0 : i32
    %c0_i32_2 = arith.constant 0 : i32
    return %c0_i32, %c0_i32_0, %c0_i32_1 : i32, i32, i32
  }
  func.func @transform_2(%arg0: i32) -> (i32, i32, i32) {
    %c0_i32 = arith.constant 0 : i32
    %c0_i32_0 = arith.constant 0 : i32
    %c0_i32_1 = arith.constant 0 : i32
    return %arg0, %c0_i32, %c0_i32_0 : i32, i32, i32
  }
}

</mosaic_0001>

<llo_original>
// kernel: single_conv_forward.3
$region0: #{single_conv_forward.3}
  #allocation0 [shape = 'u32[]', space=smem, size = 0x4, offset = 0x4, fixed_abs, tag = 'smem constant byte address 0x4 - core index']
  #allocation1 [shape = 'u32[72,128]{1,0:T(1,128)}', space=vmem, size = 0x9000, scoped, tag = 'internal scratch']
  %s0 = inlined_call_operand.hbm [shape: f32[2,8,16], index: 0, kind: input, shape index: {}, may-alias: {0,2}]
  %s1 = inlined_call_operand.vmem [shape: f32[2,8,1], index: 1, kind: input, shape index: {}]
  %s2 = inlined_call_operand.hbm [shape: f32[2,8,16], index: 2, kind: output, shape index: {}, may-alias: {0,2}]
  %s3 = sld [smem:[#allocation0]]
  $region45: #{single_conv_forward.3} parent=0
    _
  %s5 = ssub.s32 1, %s3
  %s6 = scalar_select 0, %s5, %s3
  $region1: #{single_conv_forward.3} parent=0
    #allocation2 [shape = 'u8[8192]{0}', space=vmem, size = 0x2000, scoped, tag = 'input window, operand 0']
    #allocation3 [shape = 's32[2]{0}', space=sflag, size = 0x8, scoped, tag = 'scoped memory for single_conv_forward.3']
    #allocation4 [shape = 's32[2]{0}', space=sflag, size = 0x8, scoped, tag = 'scoped memory for single_conv_forward.3']
    #allocation5 [shape = 'u8[8192]{0}', space=vmem, size = 0x2000, scoped, tag = 'output window, operand 0']
    %7 = vsyncpa [#allocation3], 0
    %s8 = scalar_lea.sflag [#allocation3], 1
    %9 = vsyncpa %s8, 0
    %10 = vsyncpa [#allocation4], 0
    %s11 = scalar_lea.sflag [#allocation4], 1
    %12 = vsyncpa %s11, 0
    loop: start=0, step=1, limit=4
    $region2: #{single_conv_forward.3} parent=1 // loop_pre_header
      _
    $region3: #{single_conv_forward.3} parent=1 // loop_header
      %s14 = sphi 0, %s18
      %p15 = scmp.ge.s32.totalorder %s14, 4
      %s24 = sphi 0, %s26
      %s27 = sphi 0, %s24
      %s28 = sphi 0, %s27
      %s44 = sphi 0, %s28
      %s48 = sphi 0, %s48
      %s50 = sphi 0, %s48
      %s51 = sphi 0, %s50
      %s65 = sphi 0, %s51
      %s71 = sphi 0, %s73
      %s74 = sphi 0, %s71
      %s75 = sphi 0, %s74
      %s91 = sphi 0, %s75
    $region4: #{single_conv_forward.3} parent=1 // loop_header_branch
      %17 = sbr.rel (%p15) target = $region8
    $region5: #{single_conv_forward.3} parent=1 // loop_body
      %s19 = ssub.s32 %s14, 1
      %s20 = ssub.s32 %s14, 2
      %s21 = sadd.s32 %s14, 1
      %s22 = ssub.s32 %s14, %s21
      %p23 = scmp.eq.s32.totalorder %s22, 0
      %s25 = sadd.s32 %s24, 1
      %s26 = scalar_select %p23, %s24, %s25
      %p29 = pneg %p23
      %p30 = scmp.eq.s32.totalorder %s14, 1
      %p31 = por %p29, %p30
      %p32 = scmp.ne.s32.totalorder %s24, %s27
      %p33 = scmp.eq.s32.totalorder %s14, 0
      %p34 = por %p32, %p33
      %p35 = scmp.ne.s32.totalorder %s24, %s27
      %p36 = scmp.eq.s32.totalorder %s19, 1
      %p37 = por %p35, %p36
      %p38 = scmp.ne.s32.totalorder %s27, %s28
      %p39 = scmp.eq.s32.totalorder %s19, 0
      %p40 = por %p38, %p39
      %p41 = scmp.ne.s32.totalorder %s27, %s28
      %p42 = scmp.eq.s32.totalorder %s20, 1
      %p43 = por %p41, %p42
      %p45 = scmp.ne.s32.totalorder %s28, %s44
      %p46 = scmp.eq.s32.totalorder %s20, 0
      %p47 = por %p45, %p46
      %s49 = sadd.s32 %s48, 1
      %p52 = scmp.eq.s32.totalorder %s14, 1
      %p53 = scmp.ne.s32.totalorder %s48, %s50
      %p54 = scmp.eq.s32.totalorder %s14, 0
      %p55 = por %p53, %p54
      %p56 = scmp.ne.s32.totalorder %s48, %s50
      %p57 = scmp.eq.s32.totalorder %s19, 1
      %p58 = por %p56, %p57
      %p59 = scmp.ne.s32.totalorder %s50, %s51
      %p60 = scmp.eq.s32.totalorder %s19, 0
      %p61 = por %p59, %p60
      %p62 = scmp.ne.s32.totalorder %s50, %s51
      %p63 = scmp.eq.s32.totalorder %s20, 1
      %p64 = por %p62, %p63
      %p66 = scmp.ne.s32.totalorder %s51, %s65
      %p67 = scmp.eq.s32.totalorder %s20, 0
      %p68 = por %p66, %p67
      %s69 = ssub.s32 %s14, %s21
      %p70 = scmp.eq.s32.totalorder %s69, 0
      %s72 = sadd.s32 %s71, 1
      %s73 = scalar_select %p70, %s71, %s72
      %p76 = pneg %p70
      %p77 = scmp.eq.s32.totalorder %s14, 1
      %p78 = por %p76, %p77
      %p79 = scmp.ne.s32.totalorder %s71, %s74
      %p80 = scmp.eq.s32.totalorder %s14, 0
      %p81 = por %p79, %p80
      %p82 = scmp.ne.s32.totalorder %s71, %s74
      %p83 = scmp.eq.s32.totalorder %s19, 1
      %p84 = por %p82, %p83
      %p85 = scmp.ne.s32.totalorder %s74, %s75
      %p86 = scmp.eq.s32.totalorder %s19, 0
      %p87 = por %p85, %p86
      %p88 = scmp.ne.s32.totalorder %s74, %s75
      %p89 = scmp.eq.s32.totalorder %s20, 1
      %p90 = por %p88, %p89
      %p92 = scmp.ne.s32.totalorder %s75, %s91
      %p93 = scmp.eq.s32.totalorder %s20, 0
      %p94 = por %p92, %p93
      %p95 = scmp.le.s32.totalorder 1, %s14
      %p96 = scmp.lt.s32.totalorder %s14, 3
      %p97 = pnand %p95, %p96
      %p98 = pneg %p97
      // Predicated region
      $region9: #{single_conv_forward.3} parent=5 // pred_check
        _
      $region10: #{single_conv_forward.3} parent=5 // pred_check_branch
        %100 = sbr.rel (%p97) target = $region12
      $region11: #{single_conv_forward.3} parent=5 // pred_region
        %s101 = ssub.s32 %s14, 1
        // Predicated region
        $region13: #{single_conv_forward.3} parent=11 // pred_check
          %p102 = pneg %p61
        $region14: #{single_conv_forward.3} parent=11 // pred_check_branch
          %104 = sbr.rel (%p102) target = $region16
        $region15: #{single_conv_forward.3} parent=11 // pred_region
          _
        $region16: #{single_conv_forward.3} parent=11 // pred_fallthru
          _
      $region12: #{single_conv_forward.3} parent=5 // pred_fallthru
        _
      %p105 = scmp.lt.s32.totalorder %s14, 2
      // Predicated region
      $region17: #{single_conv_forward.3} parent=5 // pred_check
        %p106 = pneg %p105
      $region18: #{single_conv_forward.3} parent=5 // pred_check_branch
        %108 = sbr.rel (%p106) target = $region20
      $region19: #{single_conv_forward.3} parent=5 // pred_region
        // Predicated region
        $region21: #{single_conv_forward.3} parent=19 // pred_check
          %p109 = pneg %p34
        $region22: #{single_conv_forward.3} parent=19 // pred_check_branch
          %111 = sbr.rel (%p109) target = $region24
        $region23: #{single_conv_forward.3} parent=19 // pred_region
          %s112 = sand.u32 %s24, 1
          %s113 = scalar_lea.sflag [#allocation3], %s112
          %s114 = sand.u32 %s24, 1
          %s115 = smul.addr %s114, 8
          %s116 = scalar_lea.vmem [#allocation2], %s115
          %118 = vsyncadd %s113, 0
          %s119 = smul.addr %s14, 8
          %s120 = scalar_lea.hbm %s0, %s119
          %s122 = sshll.u32 %s120, 4
          %s123 = int_to_ptr.hbm [resolvable:$true] %s122
          %s124 = sshll.u32 %s116, 4
          %s125 = int_to_ptr.vmem [resolvable:$true] %s124
          %127 = dma.hbm_to_vmem [thread:$0]  %s123, 128, %s125, %s113
        $region24: #{single_conv_forward.3} parent=19 // pred_fallthru
          _
      $region20: #{single_conv_forward.3} parent=5 // pred_fallthru
        _
      %p128 = scmp.le.s32.totalorder 1, %s14
      %p129 = scmp.lt.s32.totalorder %s14, 3
      %p130 = pnand %p128, %p129
      %p131 = pneg %p130
      // Predicated region
      $region25: #{single_conv_forward.3} parent=5 // pred_check
        _
      $region26: #{single_conv_forward.3} parent=5 // pred_check_branch
        %133 = sbr.rel (%p130) target = $region28
      $region27: #{single_conv_forward.3} parent=5 // pred_region
        %s134 = ssub.s32 %s14, 1
        %s135 = sand.u32 %s27, 1
        %s136 = scalar_lea.sflag [#allocation3], %s135
        %s137 = sand.u32 %s27, 1
        %s138 = smul.addr %s137, 8
        %s139 = scalar_lea.vmem [#allocation2], %s138
        // Predicated region
        $region29: #{single_conv_forward.3} parent=27 // pred_check
          %p140 = pneg %p40
        $region30: #{single_conv_forward.3} parent=27 // pred_check_branch
          %142 = sbr.rel (%p140) target = $region32
        $region31: #{single_conv_forward.3} parent=27 // pred_region
          %144 = dma.done %s136, 128
        $region32: #{single_conv_forward.3} parent=27 // pred_fallthru
          _
        %s145 = sand.u32 %s27, 1
        %s146 = scalar_lea.sflag [#allocation3], %s145
        %s147 = sand.u32 %s27, 1
        %s148 = smul.addr %s147, 8
        %s149 = scalar_lea.vmem [#allocation2], %s148
        %p150 = pneg %p40
        %p151 = pneg %p37
        %p152 = pneg %p61
        %p153 = pneg %p58
        %p154 = pneg %p87
        %p155 = pneg %p84
        %s156 = sand.u32 %s74, 1
        %s157 = scalar_lea.sflag [#allocation4], %s156
        %s158 = sand.u32 %s74, 1
        %s159 = smul.addr %s158, 8
        %s160 = scalar_lea.vmem [#allocation5], %s159
        %v161 = vld [vmem:[%s139] sm:$0xff]
        %v162 = vld [vmem:[%s1] sm:$0xff]
        %s163 = scalar_lea.vmem %s1, 8
        %v164 = vld [vmem:[%s163] sm:$0xff]
        %166 = vset.pattern.permute.xlu0 0
        %167 = vperm.xlu0 %166, %v162
        %v168 = vpop.permute.xlu0 %167
        %v170 = vmul.f32 %v161, %v168
        %172 = vset.pattern.permute.xlu0 0
        %173 = vperm.xlu0 %172, %v164
        %v174 = vpop.permute.xlu0 %173
        %v176 = vadd.f32 %v170, %v174
        %vm177 = vcmask 130048
        %178 = vst.msk [vmem:[%s160] sm:$0xff] %vm177, %v176
        %s179 = sand.u32 %s74, 1
        %s180 = scalar_lea.sflag [#allocation4], %s179
        %s181 = sand.u32 %s74, 1
        %s182 = smul.addr %s181, 8
        %s183 = scalar_lea.vmem [#allocation5], %s182
        // Predicated region
        $region33: #{single_conv_forward.3} parent=27 // pred_check
          %p184 = pneg %p84
        $region34: #{single_conv_forward.3} parent=27 // pred_check_branch
          %186 = sbr.rel (%p184) target = $region36
        $region35: #{single_conv_forward.3} parent=27 // pred_region
          %188 = vsyncadd %s180, 0
          %s189 = smul.addr %s19, 8
          %s190 = scalar_lea.hbm %s2, %s189
          %s192 = sshll.u32 %s183, 4
          %s193 = int_to_ptr.vmem [resolvable:$true] %s192
          %s194 = sshll.u32 %s190, 4
          %s195 = int_to_ptr.hbm [resolvable:$true] %s194
          %197 = dma.vmem_to_hbm [thread:$0]  %s193, 128, %s195, %s180
        $region36: #{single_conv_forward.3} parent=27 // pred_fallthru
          _
      $region28: #{single_conv_forward.3} parent=5 // pred_fallthru
        _
      %p198 = scmp.le.s32.totalorder 2, %s14
      // Predicated region
      $region37: #{single_conv_forward.3} parent=5 // pred_check
        %p199 = pneg %p198
      $region38: #{single_conv_forward.3} parent=5 // pred_check_branch
        %201 = sbr.rel (%p199) target = $region40
      $region39: #{single_conv_forward.3} parent=5 // pred_region
        %s202 = ssub.s32 %s14, 2
        // Predicated region
        $region41: #{single_conv_forward.3} parent=39 // pred_check
          %p203 = pneg %p90
        $region42: #{single_conv_forward.3} parent=39 // pred_check_branch
          %205 = sbr.rel (%p203) target = $region44
        $region43: #{single_conv_forward.3} parent=39 // pred_region
          %s206 = sand.u32 %s75, 1
          %s207 = scalar_lea.sflag [#allocation4], %s206
          %s208 = sand.u32 %s75, 1
          %s209 = smul.addr %s208, 8
          %s210 = scalar_lea.vmem [#allocation5], %s209
          %212 = dma.done %s207, 128
        $region44: #{single_conv_forward.3} parent=39 // pred_fallthru
          _
      $region40: #{single_conv_forward.3} parent=5 // pred_fallthru
        _
    $region6: #{single_conv_forward.3} parent=1 // loop_footer
      %s18 = sadd.s32 1, %s14
    $region7: #{single_conv_forward.3} parent=1 // loop_footer_branch
      %13 = sbr.rel target = $region3
    $region8: #{single_conv_forward.3} parent=1 // loop_exit
      _
    %213 = vsyncpa [#allocation3], 1
    %s214 = scalar_lea.sflag [#allocation3], 1
    %215 = vsyncpa %s214, 1
    %216 = vsyncpa [#allocation4], 1
    %s217 = scalar_lea.sflag [#allocation4], 1
    %218 = vsyncpa %s217, 1

// kernel: single_conv_forward.2
$region0: #{single_conv_forward.2}
  #allocation0 [shape = 'u32[]', space=smem, size = 0x4, offset = 0x4, fixed_abs, tag = 'smem constant byte address 0x4 - core index']
  #allocation1 [shape = 'u32[72,128]{1,0:T(1,128)}', space=vmem, size = 0x9000, scoped, tag = 'internal scratch']
  #allocation2 [shape = 'f32[4,1,20]{2,1,0:T(1,128)}', space=vmem, size = 0x800, scoped, tag = 'scratch operand']
  %s0 = inlined_call_operand.vmem [shape: f32[2,4,16], index: 0, kind: input, shape index: {}]
  %s1 = inlined_call_operand.vmem [shape: f32[3,8,4], index: 1, kind: input, shape index: {}]
  %s2 = inlined_call_operand.vmem [shape: f32[8,1], index: 2, kind: input, shape index: {}]
  %s3 = inlined_call_operand.hbm [shape: f32[2,8,16], index: 3, kind: output, shape index: {0}]
  %s4 = inlined_call_operand.vmem [shape: f32[2,8,2], index: 4, kind: output, shape index: {1}]
  %5 = xla_tuple %s3, %s4
  %s6 = sld [smem:[#allocation0]]
  $region53: #{single_conv_forward.2} parent=0
    _
  %s8 = ssub.s32 1, %s6
  %s9 = scalar_select 0, %s8, %s6
  $region1: #{single_conv_forward.2} parent=0
    #allocation3 [shape = 'u8[8192]{0}', space=vmem, size = 0x2000, scoped, tag = 'output window, operand 0']
    #allocation4 [shape = 's32[2]{0}', space=sflag, size = 0x8, scoped, tag = 'scoped memory for single_conv_forward.2']
    %10 = vsyncpa [#allocation4], 0
    %s11 = scalar_lea.sflag [#allocation4], 1
    %12 = vsyncpa %s11, 0
    loop: start=0, step=1, limit=4
    $region2: #{single_conv_forward.2} parent=1 // loop_pre_header
      _
    $region3: #{single_conv_forward.2} parent=1 // loop_header
      %s14 = sphi 0, %s18
      %p15 = scmp.ge.s32.totalorder %s14, 4
      %s24 = sphi 0, %s26
      %s27 = sphi 0, %s24
      %s28 = sphi 0, %s27
      %s44 = sphi 0, %s28
      %s48 = sphi 0, %s48
      %s50 = sphi 0, %s48
      %s51 = sphi 0, %s50
      %s65 = sphi 0, %s51
      %s69 = sphi 0, %s69
      %s71 = sphi 0, %s69
      %s72 = sphi 0, %s71
      %s86 = sphi 0, %s72
      %s92 = sphi 0, %s94
      %s95 = sphi 0, %s92
      %s96 = sphi 0, %s95
      %s112 = sphi 0, %s96
      %s118 = sphi 0, %s120
      %s121 = sphi 0, %s118
      %s122 = sphi 0, %s121
      %s138 = sphi 0, %s122
    $region4: #{single_conv_forward.2} parent=1 // loop_header_branch
      %17 = sbr.rel (%p15) target = $region8
    $region5: #{single_conv_forward.2} parent=1 // loop_body
      %s19 = ssub.s32 %s14, 1
      %s20 = ssub.s32 %s14, 2
      %s21 = sadd.s32 %s14, 1
      %s22 = ssub.s32 %s14, %s21
      %p23 = scmp.eq.s32.totalorder %s22, 0
      %s25 = sadd.s32 %s24, 1
      %s26 = scalar_select %p23, %s24, %s25
      %p29 = pneg %p23
      %p30 = scmp.eq.s32.totalorder %s14, 1
      %p31 = por %p29, %p30
      %p32 = scmp.ne.s32.totalorder %s24, %s27
      %p33 = scmp.eq.s32.totalorder %s14, 0
      %p34 = por %p32, %p33
      %p35 = scmp.ne.s32.totalorder %s24, %s27
      %p36 = scmp.eq.s32.totalorder %s19, 1
      %p37 = por %p35, %p36
      %p38 = scmp.ne.s32.totalorder %s27, %s28
      %p39 = scmp.eq.s32.totalorder %s19, 0
      %p40 = por %p38, %p39
      %p41 = scmp.ne.s32.totalorder %s27, %s28
      %p42 = scmp.eq.s32.totalorder %s20, 1
      %p43 = por %p41, %p42
      %p45 = scmp.ne.s32.totalorder %s28, %s44
      %p46 = scmp.eq.s32.totalorder %s20, 0
      %p47 = por %p45, %p46
      %s49 = sadd.s32 %s48, 1
      %p52 = scmp.eq.s32.totalorder %s14, 1
      %p53 = scmp.ne.s32.totalorder %s48, %s50
      %p54 = scmp.eq.s32.totalorder %s14, 0
      %p55 = por %p53, %p54
      %p56 = scmp.ne.s32.totalorder %s48, %s50
      %p57 = scmp.eq.s32.totalorder %s19, 1
      %p58 = por %p56, %p57
      %p59 = scmp.ne.s32.totalorder %s50, %s51
      %p60 = scmp.eq.s32.totalorder %s19, 0
      %p61 = por %p59, %p60
      %p62 = scmp.ne.s32.totalorder %s50, %s51
      %p63 = scmp.eq.s32.totalorder %s20, 1
      %p64 = por %p62, %p63
      %p66 = scmp.ne.s32.totalorder %s51, %s65
      %p67 = scmp.eq.s32.totalorder %s20, 0
      %p68 = por %p66, %p67
      %s70 = sadd.s32 %s69, 1
      %p73 = scmp.eq.s32.totalorder %s14, 1
      %p74 = scmp.ne.s32.totalorder %s69, %s71
      %p75 = scmp.eq.s32.totalorder %s14, 0
      %p76 = por %p74, %p75
      %p77 = scmp.ne.s32.totalorder %s69, %s71
      %p78 = scmp.eq.s32.totalorder %s19, 1
      %p79 = por %p77, %p78
      %p80 = scmp.ne.s32.totalorder %s71, %s72
      %p81 = scmp.eq.s32.totalorder %s19, 0
      %p82 = por %p80, %p81
      %p83 = scmp.ne.s32.totalorder %s71, %s72
      %p84 = scmp.eq.s32.totalorder %s20, 1
      %p85 = por %p83, %p84
      %p87 = scmp.ne.s32.totalorder %s72, %s86
      %p88 = scmp.eq.s32.totalorder %s20, 0
      %p89 = por %p87, %p88
      %s90 = ssub.s32 %s14, %s21
      %p91 = scmp.eq.s32.totalorder %s90, 0
      %s93 = sadd.s32 %s92, 1
      %s94 = scalar_select %p91, %s92, %s93
      %p97 = pneg %p91
      %p98 = scmp.eq.s32.totalorder %s14, 1
      %p99 = por %p97, %p98
      %p100 = scmp.ne.s32.totalorder %s92, %s95
      %p101 = scmp.eq.s32.totalorder %s14, 0
      %p102 = por %p100, %p101
      %p103 = scmp.ne.s32.totalorder %s92, %s95
      %p104 = scmp.eq.s32.totalorder %s19, 1
      %p105 = por %p103, %p104
      %p106 = scmp.ne.s32.totalorder %s95, %s96
      %p107 = scmp.eq.s32.totalorder %s19, 0
      %p108 = por %p106, %p107
      %p109 = scmp.ne.s32.totalorder %s95, %s96
      %p110 = scmp.eq.s32.totalorder %s20, 1
      %p111 = por %p109, %p110
      %p113 = scmp.ne.s32.totalorder %s96, %s112
      %p114 = scmp.eq.s32.totalorder %s20, 0
      %p115 = por %p113, %p114
      %s116 = ssub.s32 %s14, %s21
      %p117 = scmp.eq.s32.totalorder %s116, 0
      %s119 = sadd.s32 %s118, 1
      %s120 = scalar_select %p117, %s118, %s119
      %p123 = pneg %p117
      %p124 = scmp.eq.s32.totalorder %s14, 1
      %p125 = por %p123, %p124
      %p126 = scmp.ne.s32.totalorder %s118, %s121
      %p127 = scmp.eq.s32.totalorder %s14, 0
      %p128 = por %p126, %p127
      %p129 = scmp.ne.s32.totalorder %s118, %s121
      %p130 = scmp.eq.s32.totalorder %s19, 1
      %p131 = por %p129, %p130
      %p132 = scmp.ne.s32.totalorder %s121, %s122
      %p133 = scmp.eq.s32.totalorder %s19, 0
      %p134 = por %p132, %p133
      %p135 = scmp.ne.s32.totalorder %s121, %s122
      %p136 = scmp.eq.s32.totalorder %s20, 1
      %p137 = por %p135, %p136
      %p139 = scmp.ne.s32.totalorder %s122, %s138
      %p140 = scmp.eq.s32.totalorder %s20, 0
      %p141 = por %p139, %p140
      %p142 = scmp.le.s32.totalorder 1, %s14
      %p143 = scmp.lt.s32.totalorder %s14, 3
      %p144 = pnand %p142, %p143
      %p145 = pneg %p144
      // Predicated region
      $region9: #{single_conv_forward.2} parent=5 // pred_check
        _
      $region10: #{single_conv_forward.2} parent=5 // pred_check_branch
        %147 = sbr.rel (%p144) target = $region12
      $region11: #{single_conv_forward.2} parent=5 // pred_region
        %s148 = ssub.s32 %s14, 1
        // Predicated region
        $region13: #{single_conv_forward.2} parent=11 // pred_check
          %p149 = pneg %p61
        $region14: #{single_conv_forward.2} parent=11 // pred_check_branch
          %151 = sbr.rel (%p149) target = $region16
        $region15: #{single_conv_forward.2} parent=11 // pred_region
          _
        $region16: #{single_conv_forward.2} parent=11 // pred_fallthru
          _
        // Predicated region
        $region17: #{single_conv_forward.2} parent=11 // pred_check
          %p152 = pneg %p82
        $region18: #{single_conv_forward.2} parent=11 // pred_check_branch
          %154 = sbr.rel (%p152) target = $region20
        $region19: #{single_conv_forward.2} parent=11 // pred_region
          _
        $region20: #{single_conv_forward.2} parent=11 // pred_fallthru
          _
      $region12: #{single_conv_forward.2} parent=5 // pred_fallthru
        _
      %p155 = scmp.lt.s32.totalorder %s14, 2
      // Predicated region
      $region21: #{single_conv_forward.2} parent=5 // pred_check
        %p156 = pneg %p155
      $region22: #{single_conv_forward.2} parent=5 // pred_check_branch
        %158 = sbr.rel (%p156) target = $region24
      $region23: #{single_conv_forward.2} parent=5 // pred_region
        // Predicated region
        $region25: #{single_conv_forward.2} parent=23 // pred_check
          %p159 = pneg %p34
        $region26: #{single_conv_forward.2} parent=23 // pred_check_branch
          %161 = sbr.rel (%p159) target = $region28
        $region27: #{single_conv_forward.2} parent=23 // pred_region
          %p162 = scmp.lt.s32.totalorder %s14, 1
          %s163 = scalar_select %p162, %s14, 1
          %s164 = smul.addr %s163, 4
          %s165 = scalar_lea.vmem %s0, %s164
        $region28: #{single_conv_forward.2} parent=23 // pred_fallthru
          _
      $region24: #{single_conv_forward.2} parent=5 // pred_fallthru
        _
      %p166 = scmp.le.s32.totalorder 1, %s14
      %p167 = scmp.lt.s32.totalorder %s14, 3
      %p168 = pnand %p166, %p167
      %p169 = pneg %p168
      // Predicated region
      $region29: #{single_conv_forward.2} parent=5 // pred_check
        _
      $region30: #{single_conv_forward.2} parent=5 // pred_check_branch
        %171 = sbr.rel (%p168) target = $region32
      $region31: #{single_conv_forward.2} parent=5 // pred_region
        %s172 = ssub.s32 %s14, 1
        %p173 = scmp.lt.s32.totalorder %s19, 1
        %s174 = scalar_select %p173, %s19, 1
        %s175 = smul.addr %s174, 4
        %s176 = scalar_lea.vmem %s0, %s175
        %p177 = pneg %p40
        %p178 = pneg %p37
        %p179 = pneg %p61
        %p180 = pneg %p58
        %p181 = pneg %p82
        %p182 = pneg %p79
        %p183 = pneg %p108
        %p184 = pneg %p105
        %s185 = sand.u32 %s95, 1
        %s186 = scalar_lea.sflag [#allocation4], %s185
        %s187 = sand.u32 %s95, 1
        %s188 = smul.addr %s187, 8
        %s189 = scalar_lea.vmem [#allocation3], %s188
        %p190 = pneg %p134
        %p191 = pneg %p131
        %p192 = scmp.lt.s32.totalorder %s19, 1
        %s193 = scalar_select %p192, %s19, 1
        %s194 = smul.addr %s193, 8
        %s195 = scalar_lea.vmem %s4, %s194
        %p196 = scmp.lt.s32.totalorder %s19, 1
        %s197 = scalar_select %p196, %s19, 1
        %s198 = smul.addr %s197, 4
        %s199 = scalar_lea.vmem %s0, %s198
        %p200 = scmp.lt.s32.totalorder %s19, 1
        %s201 = scalar_select %p200, %s19, 1
        %s202 = smul.addr %s201, 8
        %s203 = scalar_lea.vmem %s4, %s202
        %v204 = vld [vmem:[%s199] sm:$0xf]
        %v206 = vunpack.c.l.s4 1983009808
        %v207 = vunpack.c.0.s8 %v206
        %v208 = vperm.slane %v204, %v207
        %v209 = vrot.slane %v208, 4
        %vm210 = vcmask 1047556
        %v211 = vsel %vm210, 0.0, %v209
        %v213 = vunpack.c.l.s4 1934713408
        %v214 = vunpack.c.0.s8 %v213
        %v215 = vperm.slane %v208, %v214
        %v217 = vunpack.c.l.s4 1934713408
        %v218 = vunpack.c.0.s8 %v217
        %v219 = vperm.slane %v211, %v218
        %v220 = vrot.slane %v215, 4
        %v221 = vsel %vm210, 0.0, %v220
        %v222 = vrot.slane %v219, 4
        %v223 = vsel %vm210, 0.0, %v222
        %228 = vrot.lane.b32.xlu0 %v215, 2
        %v229 = vpop.permute.xlu0 %228
        %230 = vrot.lane.b32.xlu0 %v221, 2
        %v231 = vpop.permute.xlu0 %230
        %232 = vrot.lane.b32.xlu0 %v219, 2
        %v233 = vpop.permute.xlu0 %232
        %234 = vrot.lane.b32.xlu0 %v223, 2
        %v235 = vpop.permute.xlu0 %234
        %vm240 = vcmask 139280
        %241 = vst.msk [vmem:[#allocation2] sm:$0x1] %vm240, %v229
        %242 = vst.msk [vmem:[#allocation2 + $0x1] sm:$0x1] %vm240, %v231
        %243 = vst.msk [vmem:[#allocation2 + $0x2] sm:$0x1] %vm240, %v233
        %244 = vst.msk [vmem:[#allocation2 + $0x3] sm:$0x1] %vm240, %v235
        %vm245 = vcmask 8192
        %246 = vst.msk [vmem:[#allocation2] sm:$0x1] %vm245, 0.0
        %247 = vst.msk [vmem:[#allocation2 + $0x1] sm:$0x1] %vm245, 0.0
        %248 = vst.msk [vmem:[#allocation2 + $0x2] sm:$0x1] %vm245, 0.0
        %249 = vst.msk [vmem:[#allocation2 + $0x3] sm:$0x1] %vm245, 0.0
        %vm250 = vcmask 155792
        %251 = vst.msk [vmem:[#allocation2] sm:$0x1] %vm250, 0.0
        %252 = vst.msk [vmem:[#allocation2 + $0x1] sm:$0x1] %vm250, 0.0
        %253 = vst.msk [vmem:[#allocation2 + $0x2] sm:$0x1] %vm250, 0.0
        %254 = vst.msk [vmem:[#allocation2 + $0x3] sm:$0x1] %vm250, 0.0
        %v255 = vld [vmem:[#allocation2] sm:$0x1]
        %v256 = vld [vmem:[#allocation2 + $0x1] sm:$0x1]
        %v257 = vld [vmem:[#allocation2 + $0x2] sm:$0x1]
        %v258 = vld [vmem:[#allocation2 + $0x3] sm:$0x1]
        %v259 = vld [vmem:[%s1] sm:$0xff]
        %s260 = scalar_lea.vmem %s1, 8
        %v261 = vld [vmem:[%s260] sm:$0xff]
        %266 = vst [vmem:[#allocation1] ss:$9 sm:$0xff] %v255
        %s267 = scalar_lea.vmem [#allocation1], 1
        %268 = vst [vmem:[%s267] ss:$9 sm:$0xff] %v256
        %s269 = scalar_lea.vmem [#allocation1], 2
        %270 = vst [vmem:[%s269] ss:$9 sm:$0xff] %v257
        %s271 = scalar_lea.vmem [#allocation1], 3
        %272 = vst [vmem:[%s271] ss:$9 sm:$0xff] %v258
        %v273 = vld [vmem:[#allocation1] sm:$0xff]
        %274 = vrot.lane.b32.xlu0 %v273, 126
        %v275 = vpop.permute.xlu0 %274
        %vm276 = vcmask 31744
        %v278 = vsel %vm276, %v261, 0
        %vm280 = vcmask 1043456
        %v281 = vsel %vm280, %v275, 0
        %283 = vmatpush.msra.mxu0 0.0
        %284 = vmatpush.msra.mxu0 0.0
        %285 = vmatpush.msra.mxu0 0.0
        %286 = vmatpush.msra.mxu0 0.0
        %287 = vmatpush.msra.mxu0 0.0
        %288 = vmatpush.msra.mxu0 0.0
        %289 = vmatpush.msra.mxu0 0.0
        %290 = vmatpush.msra.mxu0 0.0
        %291 = vmatpush.msra.mxu0 0.0
        %292 = vmatpush.msra.mxu0 0.0
        %293 = vmatpush.msra.mxu0 0.0
        %294 = vmatpush.msra.mxu0 0.0
        %295 = vmatpush.msra.mxu0 0.0
        %296 = vmatpush.msra.mxu0 0.0
        %297 = vmatpush.msra.mxu0 0.0
        %298 = vmatpush.msra.mxu0 %v281
        %299 = vmatmul.f32.gmra.mxu0 %v278
        %v300 = vpop.f32.mrf.mxu0
        %v301 = vadd.f32 0.0, %v300
        %302 = vdwg.mxu0
        %303 = vst [vmem:[#allocation1] ss:$9 sm:$0xff] %v255
        %s304 = scalar_lea.vmem [#allocation1], 1
        %305 = vst [vmem:[%s304] ss:$9 sm:$0xff] %v256
        %s306 = scalar_lea.vmem [#allocation1], 2
        %307 = vst [vmem:[%s306] ss:$9 sm:$0xff] %v257
        %s308 = scalar_lea.vmem [#allocation1], 3
        %309 = vst [vmem:[%s308] ss:$9 sm:$0xff] %v258
        %v310 = vld [vmem:[#allocation1] sm:$0xff]
        %v312 = vsel %vm276, %v259, 0
        %v314 = vsel %vm280, %v310, 0
        %316 = vmatpush.msra.mxu0 0.0
        %317 = vmatpush.msra.mxu0 0.0
        %318 = vmatpush.msra.mxu0 0.0
        %319 = vmatpush.msra.mxu0 0.0
        %320 = vmatpush.msra.mxu0 0.0
        %321 = vmatpush.msra.mxu0 0.0
        %322 = vmatpush.msra.mxu0 0.0
        %323 = vmatpush.msra.mxu0 0.0
        %324 = vmatpush.msra.mxu0 0.0
        %325 = vmatpush.msra.mxu0 0.0
        %326 = vmatpush.msra.mxu0 0.0
        %327 = vmatpush.msra.mxu0 0.0
        %328 = vmatpush.msra.mxu0 0.0
        %329 = vmatpush.msra.mxu0 0.0
        %330 = vmatpush.msra.mxu0 0.0
        %331 = vmatpush.msra.mxu0 %v314
        %332 = vmatmul.f32.gmra.mxu0 %v312
        %v333 = vpop.f32.mrf.mxu0
        %v334 = vadd.f32 %v301, %v333
        %335 = vdwg.mxu0
        %v336 = vld [vmem:[#allocation2] sm:$0x1]
        %v337 = vld [vmem:[#allocation2 + $0x1] sm:$0x1]
        %v338 = vld [vmem:[#allocation2 + $0x2] sm:$0x1]
        %v339 = vld [vmem:[#allocation2 + $0x3] sm:$0x1]
        %s340 = scalar_lea.vmem %s1, 16
        %v341 = vld [vmem:[%s340] sm:$0xff]
        %346 = vst [vmem:[#allocation1] ss:$9 sm:$0xff] %v336
        %s347 = scalar_lea.vmem [#allocation1], 1
        %348 = vst [vmem:[%s347] ss:$9 sm:$0xff] %v337
        %s349 = scalar_lea.vmem [#allocation1], 2
        %350 = vst [vmem:[%s349] ss:$9 sm:$0xff] %v338
        %s351 = scalar_lea.vmem [#allocation1], 3
        %352 = vst [vmem:[%s351] ss:$9 sm:$0xff] %v339
        %v353 = vld [vmem:[#allocation1] sm:$0xff]
        %354 = vrot.lane.b32.xlu0 %v353, 124
        %v355 = vpop.permute.xlu0 %354
        %v357 = vsel %vm276, %v341, 0
        %v359 = vsel %vm280, %v355, 0
        %361 = vmatpush.msra.mxu0 0.0
        %362 = vmatpush.msra.mxu0 0.0
        %363 = vmatpush.msra.mxu0 0.0
        %364 = vmatpush.msra.mxu0 0.0
        %365 = vmatpush.msra.mxu0 0.0
        %366 = vmatpush.msra.mxu0 0.0
        %367 = vmatpush.msra.mxu0 0.0
        %368 = vmatpush.msra.mxu0 0.0
        %369 = vmatpush.msra.mxu0 0.0
        %370 = vmatpush.msra.mxu0 0.0
        %371 = vmatpush.msra.mxu0 0.0
        %372 = vmatpush.msra.mxu0 0.0
        %373 = vmatpush.msra.mxu0 0.0
        %374 = vmatpush.msra.mxu0 0.0
        %375 = vmatpush.msra.mxu0 0.0
        %376 = vmatpush.msra.mxu0 %v359
        %377 = vmatmul.f32.gmra.mxu0 %v357
        %v378 = vpop.f32.mrf.mxu0
        %v379 = vadd.f32 0.0, %v378
        %380 = vdwg.mxu0
        %v381 = vadd.f32 %v334, %v379
        %v382 = vld [vmem:[%s2] sm:$0xff]
        %384 = vset.pattern.permute.xlu0 0
        %385 = vperm.xlu0 %384, %v382
        %v386 = vpop.permute.xlu0 %385
        %v388 = vadd.f32 %v381, %v386
        %v389 = vmax.f32 %v388, 0.0
        %v391 = vrot.slane %v389, 1
        %v392 = vrot.slane %v389, 2
        %v393 = vrot.slane %v389, 3
        %v394 = vrot.slane %v389, 4
        %v395 = vrot.slane %v389, 5
        %v396 = vrot.slane %v389, 6
        %v397 = vrot.slane %v389, 7
        %vm405 = vcmask 122880
        %v406 = vsel %vm405, %v389, 0.0
        %407 = vadd.xlane.f32.xlu0 %v406
        %v408 = vpop.xlane.xlu0 %407
        %v409 = vsel %vm405, %v391, 0.0
        %410 = vadd.xlane.f32.xlu0 %v409
        %v411 = vpop.xlane.xlu0 %410
        %v412 = vsel %vm405, %v392, 0.0
        %413 = vadd.xlane.f32.xlu0 %v412
        %v414 = vpop.xlane.xlu0 %413
        %v415 = vsel %vm405, %v393, 0.0
        %416 = vadd.xlane.f32.xlu0 %v415
        %v417 = vpop.xlane.xlu0 %416
        %v418 = vsel %vm405, %v394, 0.0
        %419 = vadd.xlane.f32.xlu0 %v418
        %v420 = vpop.xlane.xlu0 %419
        %v421 = vsel %vm405, %v395, 0.0
        %422 = vadd.xlane.f32.xlu0 %v421
        %v423 = vpop.xlane.xlu0 %422
        %v424 = vsel %vm405, %v396, 0.0
        %425 = vadd.xlane.f32.xlu0 %v424
        %v426 = vpop.xlane.xlu0 %425
        %v427 = vsel %vm405, %v397, 0.0
        %428 = vadd.xlane.f32.xlu0 %v427
        %v429 = vpop.xlane.xlu0 %428
        %v430 = vadd.f32 %v408, 0.0
        %v431 = vadd.f32 %v411, 0.0
        %v432 = vadd.f32 %v414, 0.0
        %v433 = vadd.f32 %v417, 0.0
        %v434 = vadd.f32 %v420, 0.0
        %v435 = vadd.f32 %v423, 0.0
        %v436 = vadd.f32 %v426, 0.0
        %v437 = vadd.f32 %v429, 0.0
        %v438 = vmul.f32 %v389, %v389
        %v439 = vmul.f32 %v391, %v391
        %v440 = vmul.f32 %v392, %v392
        %v441 = vmul.f32 %v393, %v393
        %v442 = vmul.f32 %v394, %v394
        %v443 = vmul.f32 %v395, %v395
        %v444 = vmul.f32 %v396, %v396
        %v445 = vmul.f32 %v397, %v397
        %v446 = vsel %vm405, %v438, 0.0
        %447 = vadd.xlane.f32.xlu0 %v446
        %v448 = vpop.xlane.xlu0 %447
        %v449 = vsel %vm405, %v439, 0.0
        %450 = vadd.xlane.f32.xlu0 %v449
        %v451 = vpop.xlane.xlu0 %450
        %v452 = vsel %vm405, %v440, 0.0
        %453 = vadd.xlane.f32.xlu0 %v452
        %v454 = vpop.xlane.xlu0 %453
        %v455 = vsel %vm405, %v441, 0.0
        %456 = vadd.xlane.f32.xlu0 %v455
        %v457 = vpop.xlane.xlu0 %456
        %v458 = vsel %vm405, %v442, 0.0
        %459 = vadd.xlane.f32.xlu0 %v458
        %v460 = vpop.xlane.xlu0 %459
        %v461 = vsel %vm405, %v443, 0.0
        %462 = vadd.xlane.f32.xlu0 %v461
        %v463 = vpop.xlane.xlu0 %462
        %v464 = vsel %vm405, %v444, 0.0
        %465 = vadd.xlane.f32.xlu0 %v464
        %v466 = vpop.xlane.xlu0 %465
        %v467 = vsel %vm405, %v445, 0.0
        %468 = vadd.xlane.f32.xlu0 %v467
        %v469 = vpop.xlane.xlu0 %468
        %v470 = vadd.f32 %v448, 0.0
        %v471 = vadd.f32 %v451, 0.0
        %v472 = vadd.f32 %v454, 0.0
        %v473 = vadd.f32 %v457, 0.0
        %v474 = vadd.f32 %v460, 0.0
        %v475 = vadd.f32 %v463, 0.0
        %v476 = vadd.f32 %v466, 0.0
        %v477 = vadd.f32 %v469, 0.0
        %v486 = vrot.slane %v431, 7
        %vm487 = vcmask 1041409
        %v488 = vsel %vm487, %v486, %v430
        %v489 = vrot.slane %v432, 6
        %vm490 = vcmask 1042434
        %v491 = vsel %vm490, %v489, %v488
        %v492 = vrot.slane %v433, 5
        %vm493 = vcmask 1043459
        %v494 = vsel %vm493, %v492, %v491
        %v495 = vrot.slane %v434, 4
        %vm496 = vcmask 1044484
        %v497 = vsel %vm496, %v495, %v494
        %v498 = vrot.slane %v435, 3
        %vm499 = vcmask 1045509
        %v500 = vsel %vm499, %v498, %v497
        %v501 = vrot.slane %v436, 2
        %vm502 = vcmask 1046534
        %v503 = vsel %vm502, %v501, %v500
        %v504 = vrot.slane %v437, 1
        %vm505 = vcmask 1047559
        %v506 = vsel %vm505, %v504, %v503
        %v516 = vrot.slane %v471, 7
        %v517 = vsel %vm487, %v516, %v470
        %v518 = vrot.slane %v472, 6
        %v519 = vsel %vm490, %v518, %v517
        %v520 = vrot.slane %v473, 5
        %v521 = vsel %vm493, %v520, %v519
        %v522 = vrot.slane %v474, 4
        %v523 = vsel %vm496, %v522, %v521
        %v524 = vrot.slane %v475, 3
        %v525 = vsel %vm499, %v524, %v523
        %v526 = vrot.slane %v476, 2
        %v527 = vsel %vm502, %v526, %v525
        %v528 = vrot.slane %v477, 1
        %v529 = vsel %vm505, %v528, %v527
        %vm531 = vcmask 7168
        %v532 = vsel %vm531, %v506, %v529
        %vm533 = vcmask 15360
        %534 = vst.msk [vmem:[%s203] sm:$0xff] %vm533, %v532
        %535 = vst [vmem:[#allocation1] ss:$9 sm:$0xff] %v389
        %s536 = scalar_lea.vmem [#allocation1], 1
        %537 = vst [vmem:[%s536] ss:$9 sm:$0xff] %v391
        %s538 = scalar_lea.vmem [#allocation1], 2
        %539 = vst [vmem:[%s538] ss:$9 sm:$0xff] %v392
        %s540 = scalar_lea.vmem [#allocation1], 3
        %541 = vst [vmem:[%s540] ss:$9 sm:$0xff] %v393
        %s542 = scalar_lea.vmem [#allocation1], 4
        %543 = vst [vmem:[%s542] ss:$9 sm:$0xff] %v394
        %s544 = scalar_lea.vmem [#allocation1], 5
        %545 = vst [vmem:[%s544] ss:$9 sm:$0xff] %v395
        %s546 = scalar_lea.vmem [#allocation1], 6
        %547 = vst [vmem:[%s546] ss:$9 sm:$0xff] %v396
        %s548 = scalar_lea.vmem [#allocation1], 7
        %549 = vst [vmem:[%s548] ss:$9 sm:$0xff] %v397
        %v550 = vld [vmem:[#allocation1] sm:$0xff]
        %vm552 = vcmask 130048
        %553 = vst.msk [vmem:[%s189] sm:$0xff] %vm552, %v550
        %s554 = sand.u32 %s95, 1
        %s555 = scalar_lea.sflag [#allocation4], %s554
        %s556 = sand.u32 %s95, 1
        %s557 = smul.addr %s556, 8
        %s558 = scalar_lea.vmem [#allocation3], %s557
        %p559 = scmp.lt.s32.totalorder %s19, 1
        %s560 = scalar_select %p559, %s19, 1
        %s561 = smul.addr %s560, 8
        %s562 = scalar_lea.vmem %s4, %s561
        // Predicated region
        $region33: #{single_conv_forward.2} parent=31 // pred_check
          %p563 = pneg %p105
        $region34: #{single_conv_forward.2} parent=31 // pred_check_branch
          %565 = sbr.rel (%p563) target = $region36
        $region35: #{single_conv_forward.2} parent=31 // pred_region
          %567 = vsyncadd %s555, 0
          %s568 = smul.addr %s19, 8
          %s569 = scalar_lea.hbm %s3, %s568
          %s571 = sshll.u32 %s558, 4
          %s572 = int_to_ptr.vmem [resolvable:$true] %s571
          %s573 = sshll.u32 %s569, 4
          %s574 = int_to_ptr.hbm [resolvable:$true] %s573
          %576 = dma.vmem_to_hbm [thread:$0]  %s572, 128, %s574, %s555
        $region36: #{single_conv_forward.2} parent=31 // pred_fallthru
          _
        // Predicated region
        $region37: #{single_conv_forward.2} parent=31 // pred_check
          %p577 = pneg %p131
        $region38: #{single_conv_forward.2} parent=31 // pred_check_branch
          %579 = sbr.rel (%p577) target = $region40
        $region39: #{single_conv_forward.2} parent=31 // pred_region
          _
        $region40: #{single_conv_forward.2} parent=31 // pred_fallthru
          _
      $region32: #{single_conv_forward.2} parent=5 // pred_fallthru
        _
      %p580 = scmp.le.s32.totalorder 2, %s14
      // Predicated region
      $region41: #{single_conv_forward.2} parent=5 // pred_check
        %p581 = pneg %p580
      $region42: #{single_conv_forward.2} parent=5 // pred_check_branch
        %583 = sbr.rel (%p581) target = $region44
      $region43: #{single_conv_forward.2} parent=5 // pred_region
        %s584 = ssub.s32 %s14, 2
        // Predicated region
        $region45: #{single_conv_forward.2} parent=43 // pred_check
          %p585 = pneg %p111
        $region46: #{single_conv_forward.2} parent=43 // pred_check_branch
          %587 = sbr.rel (%p585) target = $region48
        $region47: #{single_conv_forward.2} parent=43 // pred_region
          %s588 = sand.u32 %s96, 1
          %s589 = scalar_lea.sflag [#allocation4], %s588
          %s590 = sand.u32 %s96, 1
          %s591 = smul.addr %s590, 8
          %s592 = scalar_lea.vmem [#allocation3], %s591
          %594 = dma.done %s589, 128
        $region48: #{single_conv_forward.2} parent=43 // pred_fallthru
          _
        // Predicated region
        $region49: #{single_conv_forward.2} parent=43 // pred_check
          %p595 = pneg %p137
        $region50: #{single_conv_forward.2} parent=43 // pred_check_branch
          %597 = sbr.rel (%p595) target = $region52
        $region51: #{single_conv_forward.2} parent=43 // pred_region
          %p598 = scmp.lt.s32.totalorder %s20, 1
          %s599 = scalar_select %p598, %s20, 1
          %s600 = smul.addr %s599, 8
          %s601 = scalar_lea.vmem %s4, %s600
        $region52: #{single_conv_forward.2} parent=43 // pred_fallthru
          _
      $region44: #{single_conv_forward.2} parent=5 // pred_fallthru
        _
    $region6: #{single_conv_forward.2} parent=1 // loop_footer
      %s18 = sadd.s32 1, %s14
    $region7: #{single_conv_forward.2} parent=1 // loop_footer_branch
      %13 = sbr.rel target = $region3
    $region8: #{single_conv_forward.2} parent=1 // loop_exit
      _
    %602 = vsyncpa [#allocation4], 1
    %s603 = scalar_lea.sflag [#allocation4], 1
    %604 = vsyncpa %s603, 1

</llo_original>
